<compile_context>
chip_gen: v7x
topology: tpu7x:2x2x1
jax: 0.10.0
libtpu: 0.0.40
codegen_flags: <defaults>
</compile_context>

<pallas_src>
import jax
import jax.numpy as jnp
from jax.experimental import pallas as pl
from jax.experimental.pallas import tpu as pltpu


# --------------------- Fused kernel: Linear + threshold + compare ------------
def fused_kernel(x_ref, w_ref, b_ref, mask_ref, out_ref, hi_ref, thr_ref):
    # Matmul + bias + threshold only once (grid step 0); x/w/b/out blocks are
    # resident (constant block index), thr persists in VMEM scratch.
    @pl.when(pl.program_id(0) == 0)
    def _():
        out = jnp.dot(x_ref[...], w_ref[...], preferred_element_type=jnp.float32)
        out = out + b_ref[...]
        out_ref[...] = out.astype(out_ref.dtype)
        # threshold = out.sum(axis=1).mean() == sum(out) / batch
        thr_ref[...] = jnp.sum(out, keepdims=True) * (1.0 / out.shape[0])

    # mask > threshold -> int8 0/1, lane/sublane-dense block, unmasked stores.
    hi_ref[...] = (mask_ref[...] > thr_ref[...]).astype(jnp.int8)


def _pick_rows_block(m0, m1):
    # Per-block VMEM budget ~8 MiB for the double-buffered (f32 mask + int8 hi)
    # pair, so the kernel scales to large masks and stays inside scoped VMEM on
    # all of v5e / v6e / v7x without recompiles or vmem_limit overrides.
    budget = 8 << 20
    bytes_per_row = m1 * (4 + 1) * 2          # 2x buffering of f32 in + i8 out
    rows = max(8, min(m0, (budget // bytes_per_row) // 8 * 8))
    return rows


def fused_forward(x, w, b, mask2d):
    B, IN = x.shape
    OUT = w.shape[1]
    M0, M1 = mask2d.shape
    rows = _pick_rows_block(M0, M1)
    grid_m = pl.cdiv(M0, rows)

    cost = pl.CostEstimate(
        flops=2 * B * IN * OUT + M0 * M1,
        transcendentals=0,
        bytes_accessed=4 * (B * IN + IN * OUT + OUT + B * OUT + M0 * M1) + M0 * M1,
    )

    out, hi = pl.pallas_call(
        fused_kernel,
        out_shape=(
            jax.ShapeDtypeStruct((B, OUT), jnp.float32),
            jax.ShapeDtypeStruct((M0, M1), jnp.int8),
        ),
        grid=(grid_m,),
        in_specs=[
            pl.BlockSpec((B, IN), lambda i: (0, 0)),      # activations (resident)
            pl.BlockSpec((IN, OUT), lambda i: (0, 0)),    # W, stored (IN, OUT)
            pl.BlockSpec((1, OUT), lambda i: (0, 0)),     # bias
            pl.BlockSpec((rows, M1), lambda i: (i, 0)),   # mask row-block
        ],
        out_specs=(
            pl.BlockSpec((B, OUT), lambda i: (0, 0)),     # written at step 0 only
            pl.BlockSpec((rows, M1), lambda i: (i, 0)),   # int8 compare result
        ),
        scratch_shapes=[pltpu.VMEM((1, 1), jnp.float32)],  # cached threshold
        compiler_params=pltpu.CompilerParams(
            dimension_semantics=("arbitrary",)),
        cost_estimate=cost,
    )(x, w, b, mask2d)
    return out, hi


# ------------------------------- Module wrapper -------------------------------
@jax.jit
def fused_path(x, w, b, mask):
    D0, D1, D2 = mask.shape
    # Row-major reshape (free): present the mask as a lane-dense (D0*D1, D2)
    # slab so compare stores are unmasked vst (D2 is a multiple of 128 here).
    mask2d = mask.reshape(D0 * D1, D2)
    out, hi2d = fused_forward(x, w, b, mask2d)
    return out, hi2d.reshape(D0, D1, D2)


def my_module_forward(x, mask, w, b):
    out, hi = fused_path(x, w, b, mask)
    # TODO(synk): `nonzero(as_tuple=True)` has a data-dependent output shape;
    # no Pallas/jit equivalent, so it runs eagerly here on the kernel's int8
    # 0/1 output (already exactly what nonzero needs -- no extra bool cast).
    hi_idx = jnp.nonzero(hi)
    return out, hi_idx


if __name__ == "__main__":
    # Small, deterministic shapes consistent with the module:
    #   input: (batch=8, in_features=32), Linear(32 -> 16), mask: (8, 16, 128)
    key = jax.random.PRNGKey(0)
    k_x, k_m, k_w, k_b = jax.random.split(key, 4)

    B, IN, OUT = 8, 32, 16
    D0, D1, D2 = 8, 16, 128

    x = jax.random.uniform(k_x, (B, IN), dtype=jnp.float32)          # torch.rand
    mask = jax.random.uniform(k_m, (D0, D1, D2), dtype=jnp.float32)  # torch.rand

    # Deterministic "Linear" params (Kaiming-uniform-ish range, fixed key).
    bound = 1.0 / (IN ** 0.5)
    w = jax.random.uniform(k_w, (IN, OUT), minval=-bound, maxval=bound,
                           dtype=jnp.float32)   # stored as W^T vs. torch layout
    b = jax.random.uniform(k_b, (1, OUT), minval=-bound, maxval=bound,
                           dtype=jnp.float32)

    out, hi_idx = my_module_forward(x, mask, w, b)
    jax.block_until_ready(out)
    for idx in hi_idx:
        jax.block_until_ready(idx)
    print("KERNEL_OK")
</pallas_src>

<mosaic_0001>
module attributes {stable_mosaic.version = 11 : i64} {
  func.func @fused_kernel(%arg0: i32, %arg1: memref<8x32xf32, #tpu.memory_space<vmem>>, %arg2: memref<32x16xf32, #tpu.memory_space<vmem>>, %arg3: memref<1x16xf32, #tpu.memory_space<vmem>>, %arg4: memref<128x128xf32, #tpu.memory_space<vmem>>, %arg5: memref<8x16xf32, #tpu.memory_space<vmem>>, %arg6: memref<128x128xi8, #tpu.memory_space<vmem>>, %arg7: memref<1x1xf32, #tpu.memory_space<vmem>>) attributes {dimension_semantics = [#tpu.dimension_semantics<arbitrary>], iteration_bounds = array<i64: 1>, scalar_prefetch = 0 : i64, scratch_operands = 1 : i64, tpu.core_type = #tpu.core_type<tc>, window_params = [{pipeline_mode = #tpu.pipeline_mode<synchronous>, transform_indices = @transform_0, window_bounds = array<i64: 8, 32>}, {pipeline_mode = #tpu.pipeline_mode<synchronous>, transform_indices = @transform_1, window_bounds = array<i64: 32, 16>}, {pipeline_mode = #tpu.pipeline_mode<synchronous>, transform_indices = @transform_2, window_bounds = array<i64: 1, 16>}, {transform_indices = @transform_3, window_bounds = array<i64: 128, 128>}, {pipeline_mode = #tpu.pipeline_mode<synchronous>, transform_indices = @transform_4, window_bounds = array<i64: 8, 16>}, {transform_indices = @transform_5, window_bounds = array<i64: 128, 128>}]} {
    %c0_i32 = arith.constant 0 : i32
    %0 = arith.cmpi eq, %arg0, %c0_i32 : i32
    %1 = arith.extui %0 : i1 to i32
    %c0_i32_0 = arith.constant 0 : i32
    %2 = arith.cmpi ne, %1, %c0_i32_0 : i32
    scf.if %2 {
      %c0_6 = arith.constant 0 : index
      %c0_7 = arith.constant 0 : index
      %9 = vector.load %arg1[%c0_6, %c0_7] : memref<8x32xf32, #tpu.memory_space<vmem>>, vector<8x32xf32>
      %c0_8 = arith.constant 0 : index
      %c0_9 = arith.constant 0 : index
      %10 = vector.load %arg2[%c0_8, %c0_9] : memref<32x16xf32, #tpu.memory_space<vmem>>, vector<32x16xf32>
      %cst = arith.constant dense<0.000000e+00> : vector<8x16xf32>
      %11 = tpu.matmul %9, %10, %cst {dimension_numbers = #tpu.dot_dimension_numbers<[1], [0], [0], [1], [0, 0, 1, 1], [], []>} : vector<8x32xf32>, vector<32x16xf32>, vector<8x16xf32> -> vector<8x16xf32>
      %c0_10 = arith.constant 0 : index
      %c0_11 = arith.constant 0 : index
      %12 = vector.load %arg3[%c0_10, %c0_11] : memref<1x16xf32, #tpu.memory_space<vmem>>, vector<1x16xf32>
      %13 = vector.broadcast %12 : vector<1x16xf32> to vector<8x16xf32>
      %14 = arith.addf %11, %13 : vector<8x16xf32>
      %c0_12 = arith.constant 0 : index
      %c0_13 = arith.constant 0 : index
      %15 = vector.load %arg5[%c0_12, %c0_13] : memref<8x16xf32, #tpu.memory_space<vmem>>, vector<8x16xf32>
      tpu.vector_store %arg5[%c0_12, %c0_13], %14 {strides = array<i32>} : memref<8x16xf32, #tpu.memory_space<vmem>>, vector<8x16xf32>,
      %16 = vector.shape_cast %14 : vector<8x16xf32> to vector<1x8x16xf32>
      %cst_14 = arith.constant dense<0.000000e+00> : vector<1xf32>
      %17 = vector.multi_reduction <add>, %16, %cst_14 [1, 2] : vector<1x8x16xf32> to vector<1xf32>
      %18 = vector.shape_cast %17 : vector<1xf32> to vector<1x1x1xf32>
      %19 = vector.extract %18[0, 0, 0] : f32 from vector<1x1x1xf32>
      %20 = vector.broadcast %19 : f32 to vector<1x1xf32>
      %cst_15 = arith.constant 1.250000e-01 : f32
      %21 = vector.broadcast %cst_15 : f32 to vector<1x1xf32>
      %22 = arith.mulf %20, %21 : vector<1x1xf32>
      %c0_16 = arith.constant 0 : index
      %c0_17 = arith.constant 0 : index
      %23 = vector.load %arg7[%c0_16, %c0_17] : memref<1x1xf32, #tpu.memory_space<vmem>>, vector<1x1xf32>
      tpu.vector_store %arg7[%c0_16, %c0_17], %22 {strides = array<i32>} : memref<1x1xf32, #tpu.memory_space<vmem>>, vector<1x1xf32>,
    } else {
    }
    %c0 = arith.constant 0 : index
    %c0_1 = arith.constant 0 : index
    %3 = vector.load %arg4[%c0, %c0_1] : memref<128x128xf32, #tpu.memory_space<vmem>>, vector<128x128xf32>
    %c0_2 = arith.constant 0 : index
    %c0_3 = arith.constant 0 : index
    %4 = vector.load %arg7[%c0_2, %c0_3] : memref<1x1xf32, #tpu.memory_space<vmem>>, vector<1x1xf32>
    %5 = vector.broadcast %4 : vector<1x1xf32> to vector<128x128xf32>
    %6 = arith.cmpf ogt, %3, %5 : vector<128x128xf32>
    %7 = arith.extui %6 : vector<128x128xi1> to vector<128x128xi8>
    %c0_4 = arith.constant 0 : index
    %c0_5 = arith.constant 0 : index
    %8 = vector.load %arg6[%c0_4, %c0_5] : memref<128x128xi8, #tpu.memory_space<vmem>>, vector<128x128xi8>
    tpu.vector_store %arg6[%c0_4, %c0_5], %7 {strides = array<i32>} : memref<128x128xi8, #tpu.memory_space<vmem>>, vector<128x128xi8>,
    return
  }
  func.func @transform_0(%arg0: i32) -> (i32, i32) {
    %c0_i32 = arith.constant 0 : i32
    %c0_i32_0 = arith.constant 0 : i32
    %c0_i32_1 = arith.constant 0 : i32
    return %c0_i32, %c0_i32_0 : i32, i32
  }
  func.func @transform_1(%arg0: i32) -> (i32, i32) {
    %c0_i32 = arith.constant 0 : i32
    %c0_i32_0 = arith.constant 0 : i32
    %c0_i32_1 = arith.constant 0 : i32
    return %c0_i32, %c0_i32_0 : i32, i32
  }
  func.func @transform_2(%arg0: i32) -> (i32, i32) {
    %c0_i32 = arith.constant 0 : i32
    %c0_i32_0 = arith.constant 0 : i32
    %c0_i32_1 = arith.constant 0 : i32
    return %c0_i32, %c0_i32_0 : i32, i32
  }
  func.func @transform_3(%arg0: i32) -> (i32, i32) {
    %c0_i32 = arith.constant 0 : i32
    %c0_i32_0 = arith.constant 0 : i32
    return %arg0, %c0_i32 : i32, i32
  }
  func.func @transform_4(%arg0: i32) -> (i32, i32) {
    %c0_i32 = arith.constant 0 : i32
    %c0_i32_0 = arith.constant 0 : i32
    %c0_i32_1 = arith.constant 0 : i32
    return %c0_i32, %c0_i32_0 : i32, i32
  }
  func.func @transform_5(%arg0: i32) -> (i32, i32) {
    %c0_i32 = arith.constant 0 : i32
    %c0_i32_0 = arith.constant 0 : i32
    return %arg0, %c0_i32 : i32, i32
  }
}

</mosaic_0001>

<llo_original>
// kernel: fused_path.1
$region0: #{fused_path.1}
  #allocation0 [shape = 'u32[]', space=smem, size = 0x4, offset = 0x4, fixed_abs, tag = 'smem constant byte address 0x4 - core index']
  #allocation1 [shape = 'u32[144,128]{1,0:T(1,128)}', space=vmem, size = 0x12000, scoped, tag = 'internal scratch']
  #allocation2 [shape = 'f32[1,1]{1,0:T(1,128)}', space=vmem, size = 0x200, scoped, tag = 'scratch operand']
  %s0 = inlined_call_operand.vmem [shape: f32[8,32], index: 0, kind: input, shape index: {}]
  %s1 = inlined_call_operand.vmem [shape: f32[32,16], index: 1, kind: input, shape index: {}]
  %s2 = inlined_call_operand.vmem [shape: f32[1,16], index: 2, kind: input, shape index: {}]
  %s3 = inlined_call_operand.hbm [shape: f32[128,128], index: 3, kind: input, shape index: {}]
  %s4 = inlined_call_operand.hbm [shape: f32[8,16], index: 4, kind: output, shape index: {0}]
  %s5 = inlined_call_operand.hbm [shape: s8[128,128], index: 5, kind: output, shape index: {1}]
  %6 = xla_tuple %s4, %s5
  %s7 = sld [smem:[#allocation0]]
  $region42: #{fused_path.1} parent=0
    _
  %s9 = ssub.s32 1, %s7
  %s10 = scalar_select 0, %s9, %s7
  $region1: #{fused_path.1} parent=0
    #allocation3 [shape = 'u8[65536]{0}', space=vmem, size = 0x10000, scoped, tag = 'input window, operand 3, single buffered']
    #allocation4 [shape = 's32[1]{0}', space=sflag, size = 0x4, scoped, tag = 'scoped memory for fused_path.1']
    #allocation5 [shape = 's32[1]{0}', space=sflag, size = 0x4, scoped, tag = 'scoped memory for fused_path.1']
    #allocation6 [shape = 'u8[4096]{0}', space=vmem, size = 0x1000, scoped, tag = 'output window, operand 0, single buffered']
    #allocation7 [shape = 'u8[16384]{0}', space=vmem, size = 0x4000, scoped, tag = 'output window, operand 1, single buffered']
    #allocation8 [shape = 's32[1]{0}', space=sflag, size = 0x4, scoped, tag = 'scoped memory for fused_path.1']
    %11 = vsyncpa [#allocation4], 0
    %12 = vsyncpa [#allocation5], 0
    %13 = vsyncpa [#allocation8], 0
    // Predicated region
    $region2: #{fused_path.1} parent=1 // pred_check
      _
    $region3: #{fused_path.1} parent=1 // pred_check_branch
      %15 = sbr.rel (0) target = $region5
    $region4: #{fused_path.1} parent=1 // pred_region
      _
    $region5: #{fused_path.1} parent=1 // pred_fallthru
      _
    // Predicated region
    $region6: #{fused_path.1} parent=1 // pred_check
      _
    $region7: #{fused_path.1} parent=1 // pred_check_branch
      %17 = sbr.rel (0) target = $region9
    $region8: #{fused_path.1} parent=1 // pred_region
      _
    $region9: #{fused_path.1} parent=1 // pred_fallthru
      _
    // Predicated region
    $region10: #{fused_path.1} parent=1 // pred_check
      _
    $region11: #{fused_path.1} parent=1 // pred_check_branch
      %19 = sbr.rel (0) target = $region13
    $region12: #{fused_path.1} parent=1 // pred_region
      _
    $region13: #{fused_path.1} parent=1 // pred_fallthru
      _
    // Predicated region
    $region14: #{fused_path.1} parent=1 // pred_check
      _
    $region15: #{fused_path.1} parent=1 // pred_check_branch
      %21 = sbr.rel (0) target = $region17
    $region16: #{fused_path.1} parent=1 // pred_region
      %s23 = ssub.s32 2048, 2048
      %24 = vsyncadd [#allocation4], %s23
      %s25 = sshll.u32 [#allocation3], 4
      %s26 = int_to_ptr.vmem [resolvable:$true] %s25
      %31 = dma.hbm_to_vmem [thread:$0]  %s3, 2048, %s26, [#allocation4], 128, 128, 8
    $region17: #{fused_path.1} parent=1 // pred_fallthru
      _
    // Predicated region
    $region18: #{fused_path.1} parent=1 // pred_check
      _
    $region19: #{fused_path.1} parent=1 // pred_check_branch
      %33 = sbr.rel (0) target = $region21
    $region20: #{fused_path.1} parent=1 // pred_region
      %34 = dma.done [#allocation4], 2048
    $region21: #{fused_path.1} parent=1 // pred_fallthru
      _
    %p37 = scmp.eq.s32.totalorder 0, 0
    // Predicated region
    $region22: #{fused_path.1} parent=1 // pred_check
      %p38 = pneg %p37
    $region23: #{fused_path.1} parent=1 // pred_check_branch
      %40 = sbr.rel (%p38) target = $region25
    $region24: #{fused_path.1} parent=1 // pred_region
      %v41 = vld [vmem:[%s0] sm:$0xff]
      %v42 = vld [vmem:[%s1] sm:$0xff]
      %v43 = vld [vmem:[%s1 + $0x8] sm:$0xff]
      %v44 = vld [vmem:[%s1 + $0x10] sm:$0xff]
      %v45 = vld [vmem:[%s1 + $0x18] sm:$0xff]
      %v46 = vld [vmem:[%s2] sm:$0x1]
      %v48 = vlaneseq
      %v49 = vshrl.u32 %v48, 7
      %v50 = vsub.s32 0, %v49
      %v51 = vrot.slane %v46, %v50
      %vm53 = vcmask 261120
      %v55 = vsel %vm53, %v41, 0
      %57 = vmatprep.subr.mxu0 0.0
      %58 = vmatpush1.msra.mxu0 %v42
      %59 = vmatprep.subr.mxu0 0.0
      %60 = vmatpush1.msra.mxu0 %v43
      %61 = vmatprep.subr.mxu0 0.0
      %62 = vmatpush1.msra.mxu0 %v44
      %63 = vmatprep.subr.mxu0 0.0
      %64 = vmatpush1.msra.mxu0 %v45
      %65 = vmatprep.subr.mxu0 0.0
      %66 = vmatpush1.msra.mxu0 0.0
      %67 = vmatprep.subr.mxu0 0.0
      %68 = vmatpush1.msra.mxu0 0.0
      %69 = vmatprep.subr.mxu0 0.0
      %70 = vmatpush1.msra.mxu0 0.0
      %71 = vmatprep.subr.mxu0 0.0
      %72 = vmatpush1.msra.mxu0 0.0
      %73 = vmatprep.subr.mxu0 0.0
      %74 = vmatpush1.msra.mxu0 0.0
      %75 = vmatprep.subr.mxu0 0.0
      %76 = vmatpush1.msra.mxu0 0.0
      %77 = vmatprep.subr.mxu0 0.0
      %78 = vmatpush1.msra.mxu0 0.0
      %79 = vmatprep.subr.mxu0 0.0
      %80 = vmatpush1.msra.mxu0 0.0
      %81 = vmatprep.subr.mxu0 0.0
      %82 = vmatpush1.msra.mxu0 0.0
      %83 = vmatprep.subr.mxu0 0.0
      %84 = vmatpush1.msra.mxu0 0.0
      %85 = vmatprep.subr.mxu0 0.0
      %86 = vmatpush1.msra.mxu0 0.0
      %87 = vmatprep.subr.mxu0 0.0
      %88 = vmatpush1.msra.mxu0 0.0
      %89 = vmatprep.subr.mxu0 0.0
      %90 = vmatpush1.msra.mxu0 0.0
      %91 = vmatprep.subr.mxu0 0.0
      %92 = vmatpush1.msra.mxu0 0.0
      %93 = vmatprep.subr.mxu0 0.0
      %94 = vmatpush1.msra.mxu0 0.0
      %95 = vmatprep.subr.mxu0 0.0
      %96 = vmatpush1.msra.mxu0 0.0
      %97 = vmatprep.subr.mxu0 0.0
      %98 = vmatpush1.msra.mxu0 0.0
      %99 = vmatprep.subr.mxu0 0.0
      %100 = vmatpush1.msra.mxu0 0.0
      %101 = vmatprep.subr.mxu0 0.0
      %102 = vmatpush1.msra.mxu0 0.0
      %103 = vmatprep.subr.mxu0 0.0
      %104 = vmatpush1.msra.mxu0 0.0
      %105 = vmatprep.subr.mxu0 0.0
      %106 = vmatpush1.msra.mxu0 0.0
      %107 = vmatprep.subr.mxu0 0.0
      %108 = vmatpush1.msra.mxu0 0.0
      %109 = vmatprep.subr.mxu0 0.0
      %110 = vmatpush1.msra.mxu0 0.0
      %111 = vmatprep.subr.mxu0 0.0
      %112 = vmatpush1.msra.mxu0 0.0
      %113 = vmatprep.subr.mxu0 0.0
      %114 = vmatpush1.msra.mxu0 0.0
      %115 = vmatprep.subr.mxu0 0.0
      %116 = vmatpush1.msra.mxu0 0.0
      %117 = vmatprep.subr.mxu0 0.0
      %118 = vmatpush1.msra.mxu0 0.0
      %119 = vmatprep.subr.mxu0 0.0
      %120 = vmatpush1.msra.mxu0 0.0
      %121 = vmatprep.mubr.f32.mxu0 0.0
      %122 = vmatmul.mubr.f32.gmra.mrb[0].mxu0 %v55
      %v123 = vpop.f32.mrb[0].mxu0
      %v124 = vadd.f32 %v51, %v123
      %v125 = vpop.f32.mrb[0].mxu0
      %126 = vdwg.mxu0
      %vm127 = vcmask 130048
      %128 = vst.msk [vmem:[#allocation6] sm:$0xff] %vm127, %v124
      %v129 = vsel %vm127, %v124, 0.0
      %130 = vadd.xlane.f32.xlu0 %v129
      %v131 = vpop.xlane.xlu0 %130
      %v132 = vrot.slane %v131, 4
      %v133 = vadd.f32 %v131, %v132
      %v134 = vrot.slane %v133, 2
      %v135 = vadd.f32 %v133, %v134
      %v136 = vrot.slane %v135, 1
      %v137 = vadd.f32 %v135, %v136
      %s138 = vtos %v137
      %v139 = vstv %s138
      %v140 = vmul.f32 %v139, 0.125
      %vm141 = vcmask 0
      %142 = vst.msk [vmem:[#allocation2] sm:$0x1] %vm141, %v140
    $region25: #{fused_path.1} parent=1 // pred_fallthru
      _
    %v143 = vld [vmem:[#allocation3] sm:$0xff]
    %v144 = vld [vmem:[#allocation3 + $0x8] sm:$0xff]
    %v145 = vld [vmem:[#allocation3 + $0x10] sm:$0xff]
    %v146 = vld [vmem:[#allocation3 + $0x18] sm:$0xff]
    %v147 = vld [vmem:[#allocation3 + $0x20] sm:$0xff]
    %v148 = vld [vmem:[#allocation3 + $0x28] sm:$0xff]
    %v149 = vld [vmem:[#allocation3 + $0x30] sm:$0xff]
    %v150 = vld [vmem:[#allocation3 + $0x38] sm:$0xff]
    %v151 = vld [vmem:[#allocation3 + $0x40] sm:$0xff]
    %v152 = vld [vmem:[#allocation3 + $0x48] sm:$0xff]
    %v153 = vld [vmem:[#allocation3 + $0x50] sm:$0xff]
    %v154 = vld [vmem:[#allocation3 + $0x58] sm:$0xff]
    %v155 = vld [vmem:[#allocation3 + $0x60] sm:$0xff]
    %v156 = vld [vmem:[#allocation3 + $0x68] sm:$0xff]
    %v157 = vld [vmem:[#allocation3 + $0x70] sm:$0xff]
    %v158 = vld [vmem:[#allocation3 + $0x78] sm:$0xff]
    %v159 = vld [vmem:[#allocation2] sm:$0x1]
    %v161 = vlaneseq
    %v162 = vshrl.u32 %v161, 7
    %v163 = vsub.s32 0, %v162
    %v164 = vrot.slane %v159, %v163
    %165 = vset.pattern.permute.xlu0 0
    %166 = vperm.xlu0 %165, %v164
    %v167 = vpop.permute.xlu0 %166
    %vm169 = vcmp.gt.f32.partialorder %v143, %v167
    %vm170 = vcmp.gt.f32.partialorder %v144, %v167
    %vm171 = vcmp.gt.f32.partialorder %v145, %v167
    %vm172 = vcmp.gt.f32.partialorder %v146, %v167
    %vm173 = vcmp.gt.f32.partialorder %v147, %v167
    %vm174 = vcmp.gt.f32.partialorder %v148, %v167
    %vm175 = vcmp.gt.f32.partialorder %v149, %v167
    %vm176 = vcmp.gt.f32.partialorder %v150, %v167
    %vm177 = vcmp.gt.f32.partialorder %v151, %v167
    %vm178 = vcmp.gt.f32.partialorder %v152, %v167
    %vm179 = vcmp.gt.f32.partialorder %v153, %v167
    %vm180 = vcmp.gt.f32.partialorder %v154, %v167
    %vm181 = vcmp.gt.f32.partialorder %v155, %v167
    %vm182 = vcmp.gt.f32.partialorder %v156, %v167
    %vm183 = vcmp.gt.f32.partialorder %v157, %v167
    %vm184 = vcmp.gt.f32.partialorder %v158, %v167
    %vm185 = vmpackc.low %vm170, %vm169
    %vm186 = vmpackc.low %vm172, %vm171
    %vm187 = vmpackc.even %vm186, %vm185
    %vm188 = vmpackc.low %vm174, %vm173
    %vm189 = vmpackc.low %vm176, %vm175
    %vm190 = vmpackc.even %vm189, %vm188
    %vm191 = vmpackc.low %vm178, %vm177
    %vm192 = vmpackc.low %vm180, %vm179
    %vm193 = vmpackc.even %vm192, %vm191
    %vm194 = vmpackc.low %vm182, %vm181
    %vm195 = vmpackc.low %vm184, %vm183
    %vm196 = vmpackc.even %vm195, %vm194
    %v197 = vsel %vm187, 16843009, 0
    %v198 = vsel %vm190, 16843009, 0
    %v199 = vsel %vm193, 16843009, 0
    %v200 = vsel %vm196, 16843009, 0
    %v201 = vunpack.c.0.s8 %v197
    %v202 = vunpack.c.1.s8 %v197
    %v203 = vunpack.c.2.s8 %v197
    %v204 = vunpack.c.3.s8 %v197
    %v205 = vunpack.c.0.s8 %v198
    %v206 = vunpack.c.1.s8 %v198
    %v207 = vunpack.c.2.s8 %v198
    %v208 = vunpack.c.3.s8 %v198
    %v209 = vunpack.c.0.s8 %v199
    %v210 = vunpack.c.1.s8 %v199
    %v211 = vunpack.c.2.s8 %v199
    %v212 = vunpack.c.3.s8 %v199
    %v213 = vunpack.c.0.s8 %v200
    %v214 = vunpack.c.1.s8 %v200
    %v215 = vunpack.c.2.s8 %v200
    %v216 = vunpack.c.3.s8 %v200
    %v217 = vpack.c.b16 %v201, %v201
    %v218 = vpack.c.b8 %v217, %v217
    %v219 = vpack.c.b16 %v202, %v202
    %v220 = vpack.c.b8 %v219, %v219
    %v221 = vpack.c.b16 %v203, %v203
    %v222 = vpack.c.b8 %v221, %v221
    %v223 = vpack.c.b16 %v204, %v204
    %v224 = vpack.c.b8 %v223, %v223
    %v225 = vpack.c.b16 %v205, %v205
    %v226 = vpack.c.b8 %v225, %v225
    %v227 = vpack.c.b16 %v206, %v206
    %v228 = vpack.c.b8 %v227, %v227
    %v229 = vpack.c.b16 %v207, %v207
    %v230 = vpack.c.b8 %v229, %v229
    %v231 = vpack.c.b16 %v208, %v208
    %v232 = vpack.c.b8 %v231, %v231
    %v233 = vpack.c.b16 %v209, %v209
    %v234 = vpack.c.b8 %v233, %v233
    %v235 = vpack.c.b16 %v210, %v210
    %v236 = vpack.c.b8 %v235, %v235
    %v237 = vpack.c.b16 %v211, %v211
    %v238 = vpack.c.b8 %v237, %v237
    %v239 = vpack.c.b16 %v212, %v212
    %v240 = vpack.c.b8 %v239, %v239
    %v241 = vpack.c.b16 %v213, %v213
    %v242 = vpack.c.b8 %v241, %v241
    %v243 = vpack.c.b16 %v214, %v214
    %v244 = vpack.c.b8 %v243, %v243
    %v245 = vpack.c.b16 %v215, %v215
    %v246 = vpack.c.b8 %v245, %v245
    %v247 = vpack.c.b16 %v216, %v216
    %v248 = vpack.c.b8 %v247, %v247
    %249 = vst [vmem:[#allocation7] sm:$0x3] %v218
    %250 = vst [vmem:[#allocation7 + $0x2] sm:$0x3] %v220
    %251 = vst [vmem:[#allocation7 + $0x4] sm:$0x3] %v222
    %252 = vst [vmem:[#allocation7 + $0x6] sm:$0x3] %v224
    %253 = vst [vmem:[#allocation7 + $0x8] sm:$0x3] %v226
    %254 = vst [vmem:[#allocation7 + $0xa] sm:$0x3] %v228
    %255 = vst [vmem:[#allocation7 + $0xc] sm:$0x3] %v230
    %256 = vst [vmem:[#allocation7 + $0xe] sm:$0x3] %v232
    %257 = vst [vmem:[#allocation7 + $0x10] sm:$0x3] %v234
    %258 = vst [vmem:[#allocation7 + $0x12] sm:$0x3] %v236
    %259 = vst [vmem:[#allocation7 + $0x14] sm:$0x3] %v238
    %260 = vst [vmem:[#allocation7 + $0x16] sm:$0x3] %v240
    %261 = vst [vmem:[#allocation7 + $0x18] sm:$0x3] %v242
    %262 = vst [vmem:[#allocation7 + $0x1a] sm:$0x3] %v244
    %263 = vst [vmem:[#allocation7 + $0x1c] sm:$0x3] %v246
    %264 = vst [vmem:[#allocation7 + $0x1e] sm:$0x3] %v248
    // Predicated region
    $region26: #{fused_path.1} parent=1 // pred_check
      _
    $region27: #{fused_path.1} parent=1 // pred_check_branch
      %266 = sbr.rel (0) target = $region29
    $region28: #{fused_path.1} parent=1 // pred_region
      %s268 = ssub.s32 128, 128
      %269 = vsyncadd [#allocation5], %s268
      %s271 = sshll.u32 [#allocation6], 4
      %s272 = int_to_ptr.vmem [resolvable:$true] %s271
      %274 = dma.vmem_to_hbm [thread:$0]  %s272, 128, %s4, [#allocation5]
    $region29: #{fused_path.1} parent=1 // pred_fallthru
      _
    // Predicated region
    $region30: #{fused_path.1} parent=1 // pred_check
      _
    $region31: #{fused_path.1} parent=1 // pred_check_branch
      %276 = sbr.rel (0) target = $region33
    $region32: #{fused_path.1} parent=1 // pred_region
      %s278 = ssub.s32 512, 512
      %279 = vsyncadd [#allocation8], %s278
      %s280 = sshll.u32 [#allocation7], 4
      %s281 = int_to_ptr.vmem [resolvable:$true] %s280
      %286 = dma.vmem_to_hbm [thread:$0]  %s281, 512, %s5, [#allocation8], 32, 32, 2
    $region33: #{fused_path.1} parent=1 // pred_fallthru
      _
    // Predicated region
    $region34: #{fused_path.1} parent=1 // pred_check
      _
    $region35: #{fused_path.1} parent=1 // pred_check_branch
      %288 = sbr.rel (0) target = $region37
    $region36: #{fused_path.1} parent=1 // pred_region
      %289 = dma.done [#allocation5], 128
    $region37: #{fused_path.1} parent=1 // pred_fallthru
      _
    // Predicated region
    $region38: #{fused_path.1} parent=1 // pred_check
      _
    $region39: #{fused_path.1} parent=1 // pred_check_branch
      %291 = sbr.rel (0) target = $region41
    $region40: #{fused_path.1} parent=1 // pred_region
      %292 = dma.done [#allocation8], 512
    $region41: #{fused_path.1} parent=1 // pred_fallthru
      _
    %293 = vsyncpa [#allocation4], 1
    %294 = vsyncpa [#allocation5], 1
    %295 = vsyncpa [#allocation8], 1

</llo_original>
